<compile_context>
chip_gen: v7x
topology: tpu7x:2x2x1
jax: 0.10.0
libtpu: 0.0.40
codegen_flags: <defaults>
</compile_context>

<pallas_src>
import jax
import jax.numpy as jnp
from jax.experimental import pallas as pl
from jax.experimental.pallas import tpu as pltpu


def _norm_kernel(scale_ref, bias_ref, x_ref, o_ref):
    # scale_ref / bias_ref: (RT, 1) f32 in VMEM.
    # x_ref: (RT, LT) in the input's native dtype; o_ref: (RT, LT) f32.
    v = x_ref[...].astype(jnp.float32)          # cast in-kernel (handles uint8)
    o_ref[...] = v * scale_ref[...] + bias_ref[...]


def _pick_tiles(R: int, L: int, in_itemsize: int):
    """Pick (row_tile, lane_tile) for the (R, L) view.

    Keeps the double-buffered (f32 out + native-dtype in) working set under a
    conservative ~12 MiB budget (fits v5e's 16 MiB default scoped VMEM), while
    making lane tiles as long as possible (long contiguous DMA segments,
    unmasked stores) and keeping a multi-step parallel grid for big shapes.
    """
    budget = 12 << 20                      # bytes of VMEM we allow ourselves
    per_elem = 2 * (4 + in_itemsize)       # double-buffered f32 out + input
    max_block_elems = max(8 * 128, budget // per_elem)

    # Row (sublane) tile: full extent when small, otherwise 128 rows
    # (multiple of 32 -> good packing for 8-bit inputs); Pallas masks the
    # ragged last row-block if R is not a multiple of it.
    RT = R if R <= 128 else 128

    # Lane tile: multiple of 128 when possible, sized to the VMEM budget.
    cap = max(128, ((max_block_elems // RT) // 128) * 128)
    if L % 128 == 0:
        LT = min(L, cap)
    else:
        # Full lane extent is always legal when it fits; otherwise take a
        # 128-multiple tile and let Pallas mask the partial last block.
        LT = L if L <= cap else cap
    return RT, LT


def imagenet_norm(x, mean, std, from_raw: bool = True):
    """Pallas TPU implementation of ImagenetNorm.forward.

    x:    (N, 3, H, W), any dtype (uint8 / float); cast to float32 in-kernel.
    mean: (3,) float32
    std:  (3,) float32
    returns (N, 3, H, W) float32
    """
    N, C, H, W = x.shape
    assert mean.shape == (C,) and std.shape == (C,)

    R = N * C
    L = H * W
    x2 = x.reshape(R, L)                      # free reshape, keeps native dtype

    # Fold (v/255 - mean)/std (or (v - mean)/std) into one per-row FMA.
    inv_std = 1.0 / std.astype(jnp.float32)
    scale_c = inv_std / 255.0 if from_raw else inv_std
    bias_c = -mean.astype(jnp.float32) * inv_std
    scale_r = jnp.tile(scale_c, N).reshape(R, 1)
    bias_r = jnp.tile(bias_c, N).reshape(R, 1)

    RT, LT = _pick_tiles(R, L, jnp.dtype(x.dtype).itemsize)
    grid = (pl.cdiv(R, RT), pl.cdiv(L, LT))

    out2 = pl.pallas_call(
        _norm_kernel,
        out_shape=jax.ShapeDtypeStruct((R, L), jnp.float32),
        grid=grid,
        in_specs=[
            pl.BlockSpec((RT, 1), lambda r, l: (r, 0)),    # per-row scale
            pl.BlockSpec((RT, 1), lambda r, l: (r, 0)),    # per-row bias
            pl.BlockSpec((RT, LT), lambda r, l: (r, l)),   # input tile (native dtype)
        ],
        out_specs=pl.BlockSpec((RT, LT), lambda r, l: (r, l)),
        compiler_params=pltpu.CompilerParams(
            dimension_semantics=("parallel", "parallel"),
            vmem_limit_bytes=32 << 20,
        ),
    )(scale_r, bias_r, x2)

    return out2.reshape(N, C, H, W)


if __name__ == "__main__":
    # Deterministic parameters (from the module's __init__); C=3 (ImageNet).
    mean = jnp.array([0.485, 0.456, 0.406], dtype=jnp.float32)
    std = jnp.array([0.229, 0.224, 0.225], dtype=jnp.float32)

    # Small synthetic raw uint8 image batch, NCHW.
    key = jax.random.PRNGKey(0)
    x_f = jax.random.uniform(key, (2, 3, 16, 16), dtype=jnp.float32) * 255.0
    x = x_f.astype(jnp.uint8)                  # raw [0, 255] input, kept as u8

    out = imagenet_norm(x, mean, std, from_raw=True)
    out = jax.block_until_ready(out)

    # Pure-JAX reference check (mirrors the PyTorch forward).
    ref = (x.astype(jnp.float32) / 255.0 - mean.reshape(1, 3, 1, 1)) / std.reshape(
        1, 3, 1, 1
    )
    assert out.shape == (2, 3, 16, 16) and out.dtype == jnp.float32
    assert jnp.allclose(out, ref, atol=1e-5, rtol=1e-5)

    print("KERNEL_OK")
</pallas_src>

<mosaic_0001>
module attributes {stable_mosaic.version = 11 : i64} {
  func.func @_norm_kernel(%arg0: i32, %arg1: i32, %arg2: memref<6x1xf32, #tpu.memory_space<vmem>>, %arg3: memref<6x1xf32, #tpu.memory_space<vmem>>, %arg4: memref<6x256xi8, #tpu.memory_space<vmem>>, %arg5: memref<6x256xf32, #tpu.memory_space<vmem>>) attributes {dimension_semantics = [#tpu.dimension_semantics<parallel>, #tpu.dimension_semantics<parallel>], iteration_bounds = array<i64: 1, 1>, scalar_prefetch = 0 : i64, scratch_operands = 0 : i64, tpu.core_type = #tpu.core_type<tc>, window_params = [{transform_indices = @transform_0, window_bounds = array<i64: 6, 1>}, {transform_indices = @transform_1, window_bounds = array<i64: 6, 1>}, {transform_indices = @transform_2, window_bounds = array<i64: 6, 256>}, {transform_indices = @transform_3, window_bounds = array<i64: 6, 256>}]} {
    %c0 = arith.constant 0 : index
    %c0_0 = arith.constant 0 : index
    %0 = vector.load %arg4[%c0, %c0_0] : memref<6x256xi8, #tpu.memory_space<vmem>>, vector<6x256xi8>
    %1 = arith.uitofp %0 : vector<6x256xi8> to vector<6x256xf32>
    %c0_1 = arith.constant 0 : index
    %c0_2 = arith.constant 0 : index
    %2 = vector.load %arg2[%c0_1, %c0_2] : memref<6x1xf32, #tpu.memory_space<vmem>>, vector<6x1xf32>
    %3 = vector.broadcast %2 : vector<6x1xf32> to vector<6x256xf32>
    %4 = arith.mulf %1, %3 : vector<6x256xf32>
    %c0_3 = arith.constant 0 : index
    %c0_4 = arith.constant 0 : index
    %5 = vector.load %arg3[%c0_3, %c0_4] : memref<6x1xf32, #tpu.memory_space<vmem>>, vector<6x1xf32>
    %6 = vector.broadcast %5 : vector<6x1xf32> to vector<6x256xf32>
    %7 = arith.addf %4, %6 : vector<6x256xf32>
    %c0_5 = arith.constant 0 : index
    %c0_6 = arith.constant 0 : index
    %8 = vector.load %arg5[%c0_5, %c0_6] : memref<6x256xf32, #tpu.memory_space<vmem>>, vector<6x256xf32>
    tpu.vector_store %arg5[%c0_5, %c0_6], %7 {strides = array<i32>} : memref<6x256xf32, #tpu.memory_space<vmem>>, vector<6x256xf32>,
    return
  }
  func.func @transform_0(%arg0: i32, %arg1: i32) -> (i32, i32) {
    %c0_i32 = arith.constant 0 : i32
    %c0_i32_0 = arith.constant 0 : i32
    return %arg0, %c0_i32 : i32, i32
  }
  func.func @transform_1(%arg0: i32, %arg1: i32) -> (i32, i32) {
    %c0_i32 = arith.constant 0 : i32
    %c0_i32_0 = arith.constant 0 : i32
    return %arg0, %c0_i32 : i32, i32
  }
  func.func @transform_2(%arg0: i32, %arg1: i32) -> (i32, i32) {
    %c0_i32 = arith.constant 0 : i32
    return %arg0, %arg1 : i32, i32
  }
  func.func @transform_3(%arg0: i32, %arg1: i32) -> (i32, i32) {
    %c0_i32 = arith.constant 0 : i32
    return %arg0, %arg1 : i32, i32
  }
}

</mosaic_0001>

<llo_original>
// kernel: tpu_custom_call.1
$region0: #{tpu_custom_call.1}
  #allocation0 [shape = 'u32[]', space=smem, size = 0x4, offset = 0x4, fixed_abs, tag = 'smem constant byte address 0x4 - core index']
  #allocation1 [shape = 'u32[144,128]{1,0:T(1,128)}', space=vmem, size = 0x12000, scoped, tag = 'internal scratch']
  %s0 = inlined_call_operand.vmem [shape: f32[6,1], index: 0, kind: input, shape index: {}]
  %s1 = inlined_call_operand.vmem [shape: f32[6,1], index: 1, kind: input, shape index: {}]
  %s2 = inlined_call_operand.vmem [shape: u8[6,256], index: 2, kind: input, shape index: {}]
  %s3 = inlined_call_operand.hbm [shape: f32[6,256], index: 3, kind: output, shape index: {}]
  %s4 = sld [smem:[#allocation0]]
  $region22: #{tpu_custom_call.1} parent=0
    _
  %s6 = ssub.s32 1, %s4
  %s7 = scalar_select 0, %s6, %s4
  $region1: #{tpu_custom_call.1} parent=0
    #allocation2 [shape = 'u8[8192]{0}', space=vmem, size = 0x2000, scoped, tag = 'output window, operand 0, single buffered']
    #allocation3 [shape = 's32[1]{0}', space=sflag, size = 0x4, scoped, tag = 'scoped memory for tpu_custom_call.1']
    %8 = vsyncpa [#allocation3], 0
    // Predicated region
    $region2: #{tpu_custom_call.1} parent=1 // pred_check
      _
    $region3: #{tpu_custom_call.1} parent=1 // pred_check_branch
      %10 = sbr.rel (0) target = $region5
    $region4: #{tpu_custom_call.1} parent=1 // pred_region
      _
    $region5: #{tpu_custom_call.1} parent=1 // pred_fallthru
      _
    // Predicated region
    $region6: #{tpu_custom_call.1} parent=1 // pred_check
      _
    $region7: #{tpu_custom_call.1} parent=1 // pred_check_branch
      %12 = sbr.rel (0) target = $region9
    $region8: #{tpu_custom_call.1} parent=1 // pred_region
      _
    $region9: #{tpu_custom_call.1} parent=1 // pred_fallthru
      _
    // Predicated region
    $region10: #{tpu_custom_call.1} parent=1 // pred_check
      _
    $region11: #{tpu_custom_call.1} parent=1 // pred_check_branch
      %14 = sbr.rel (0) target = $region13
    $region12: #{tpu_custom_call.1} parent=1 // pred_region
      _
    $region13: #{tpu_custom_call.1} parent=1 // pred_fallthru
      _
    %v15 = vld [vmem:[%s2] sm:$0xf]
    %v16 = vunpack.c.0.s8 %v15
    %v17 = vunpack.c.1.s8 %v15
    %v18 = vand.u32 %v16, 255
    %v19 = vand.u32 %v17, 255
    %v20 = vcvt.s32.f32 %v18
    %v21 = vcvt.s32.f32 %v19
    %v22 = vld [vmem:[%s0] sm:$0x3f]
    %24 = vset.pattern.permute.xlu0 0
    %25 = vperm.xlu0 %24, %v22
    %v26 = vpop.permute.xlu0 %25
    %v28 = vmul.f32 %v20, %v26
    %v29 = vmul.f32 %v21, %v26
    %v30 = vld [vmem:[%s1] sm:$0x3f]
    %32 = vset.pattern.permute.xlu0 0
    %33 = vperm.xlu0 %32, %v30
    %v34 = vpop.permute.xlu0 %33
    %v36 = vadd.f32 %v28, %v34
    %v37 = vadd.f32 %v29, %v34
    %38 = vst [vmem:[#allocation2] sm:$0x3f] %v36
    %39 = vst [vmem:[#allocation2 + $0x8] sm:$0x3f] %v37
    // Predicated region
    $region14: #{tpu_custom_call.1} parent=1 // pred_check
      _
    $region15: #{tpu_custom_call.1} parent=1 // pred_check_branch
      %41 = sbr.rel (0) target = $region17
    $region16: #{tpu_custom_call.1} parent=1 // pred_region
      %s43 = ssub.s32 256, 256
      %44 = vsyncadd [#allocation3], %s43
      %s46 = sshll.u32 [#allocation2], 4
      %s47 = int_to_ptr.vmem [resolvable:$true] %s46
      %49 = dma.vmem_to_hbm [thread:$0]  %s47, 256, %s3, [#allocation3]
    $region17: #{tpu_custom_call.1} parent=1 // pred_fallthru
      _
    // Predicated region
    $region18: #{tpu_custom_call.1} parent=1 // pred_check
      _
    $region19: #{tpu_custom_call.1} parent=1 // pred_check_branch
      %51 = sbr.rel (0) target = $region21
    $region20: #{tpu_custom_call.1} parent=1 // pred_region
      %52 = dma.done [#allocation3], 256
    $region21: #{tpu_custom_call.1} parent=1 // pred_fallthru
      _
    %53 = vsyncpa [#allocation3], 1

</llo_original>
